<compile_context>
chip_gen: v7x
topology: tpu7x:2x2x1
jax: 0.10.0
libtpu: 0.0.40
codegen_flags: <defaults>
</compile_context>

<pallas_src>
import jax
import jax.numpy as jnp
from jax.experimental import pallas as pl
from jax.experimental.pallas import tpu as pltpu


def _unstack_kernel(x_ref, o_ref):
    # x_ref: (Nb, Tt, 3*HW)  -- lanes [c*HW, (c+1)*HW) hold channel c
    # o_ref: (Nb, 3, Tt, HW)
    hw = o_ref.shape[-1]
    for c in range(3):  # static, fully unrolled; static (aligned) lane slices
        o_ref[:, c] = x_ref[:, :, c * hw:(c + 1) * hw]


def _vmem_capacity_bytes():
    try:
        info = pltpu.get_tpu_info()
        cap = getattr(info, "vmem_capacity_bytes", None)
        if cap:
            return int(cap)
    except Exception:
        pass
    return 64 * 1024 * 1024  # conservative default (v7x per-TensorCore VMEM)


def _divisors(n):
    return [d for d in range(1, n + 1) if n % d == 0]


def _pick_blocks(N, T, HW, itemsize, vmem_cap):
    """Pick (Nb, Tt) batch / time block sizes.

    Constraints:
      * Tt divides T and is either == T or a multiple of the dtype's sublane
        tile (8 for 4-byte, 16 for 2-byte, 32 for 1-byte dtypes), so the
        output block's (Tt, HW) trailing dims never violate the (8,128) rule.
      * Double-buffered input + output tiles (4 * Nb*Tt*3*HW*itemsize) stay
        within ~half of physical VMEM.
      * Keep >= 2 grid steps when possible (v7x has 2 TensorCores).
    """
    sublane = {4: 8, 2: 16, 1: 32}.get(itemsize, 8)
    unit = 3 * HW * itemsize                  # bytes of one (1, 1, 3*HW) slab
    budget = vmem_cap // 2                    # for 2x(in) + 2x(out) buffers
    max_units = max(1, budget // (4 * unit))  # Nb * Tt <= max_units

    t_divs = _divisors(T)
    valid_t = [d for d in t_divs if d == T or d % sublane == 0]
    fitting_t = [d for d in valid_t if d <= max_units]
    Tt = max(fitting_t) if fitting_t else min(valid_t)
    # TODO(synk): for pathologically large frames (smallest valid Tt still over
    # the VMEM budget) the lane axis should additionally be split into
    # 128-multiple chunks; not needed for typical clip sizes.

    n_divs = _divisors(N)
    fitting_n = [d for d in n_divs if d * Tt <= max_units]
    Nb = max(fitting_n) if fitting_n else 1

    # Megacore: keep at least 2 grid steps when possible.
    if (N // Nb) * (T // Tt) < 2:
        if Nb > 1:
            smaller = [d for d in n_divs if d <= N // 2]
            if smaller:
                Nb = max(smaller)
        elif N == 1:
            smaller_t = [d for d in valid_t if d <= T // 2]
            if smaller_t:
                Tt = max(smaller_t)
    return Nb, Tt


def unstack_clip(x):
    """x: (N, C, H, W) with C % 3 == 0  ->  (N, 3, T, H, W)."""
    N, C, H, W = x.shape
    assert C % 3 == 0, "channel dim must be a multiple of 3"
    T = C // 3
    HW = H * W

    # Free contiguous view: (N, 3T, H, W) -> (N, T, 3*HW).
    x3 = x.reshape(N, T, 3 * HW)

    itemsize = jnp.dtype(x.dtype).itemsize
    vmem_cap = _vmem_capacity_bytes()
    Nb, Tt = _pick_blocks(N, T, HW, itemsize, vmem_cap)

    grid = (N // Nb, T // Tt)
    tile_bytes = Nb * Tt * 3 * HW * itemsize  # one input tile (== one output tile)
    vmem_limit = int(min(vmem_cap,
                         max(16 * 1024 * 1024, 4 * tile_bytes + 4 * 1024 * 1024)))

    out = pl.pallas_call(
        _unstack_kernel,
        out_shape=jax.ShapeDtypeStruct((N, 3, T, HW), x.dtype),
        grid_spec=pltpu.PrefetchScalarGridSpec(
            num_scalar_prefetch=0,
            grid=grid,
            in_specs=[
                # Nb samples x Tt time steps, full 3*HW lane width (contiguous).
                pl.BlockSpec((Nb, Tt, 3 * HW), lambda n, tb: (n, tb, 0)),
            ],
            # Full c extent, full HW lane width -> unmasked lane-dense stores.
            out_specs=pl.BlockSpec((Nb, 3, Tt, HW), lambda n, tb: (n, 0, tb, 0)),
        ),
        compiler_params=pltpu.CompilerParams(
            dimension_semantics=("parallel", "parallel"),
            vmem_limit_bytes=vmem_limit,
        ),
    )(x3)

    return out.reshape(N, 3, T, H, W)


if __name__ == "__main__":
    key = jax.random.PRNGKey(0)
    N, T, H, W = 2, 4, 16, 16
    C = 3 * T  # 12
    x = jax.random.normal(key, (N, C, H, W), dtype=jnp.float32)

    out = jax.block_until_ready(unstack_clip(x))

    # reference (plain JAX): reshape N,T,3,H,W then move axes -> N,3,T,H,W
    ref = jnp.transpose(x.reshape(N, T, 3, H, W), (0, 2, 1, 3, 4))
    assert out.shape == (N, 3, T, H, W), out.shape
    assert out.dtype == x.dtype
    assert jnp.array_equal(out, ref), "mismatch with reference"

    print("KERNEL_OK")
</pallas_src>

<mosaic_0001>
module attributes {stable_mosaic.version = 11 : i64} {
  func.func @_unstack_kernel(%arg0: i32, %arg1: i32, %arg2: memref<1x4x768xf32, #tpu.memory_space<vmem>>, %arg3: memref<1x3x4x256xf32, #tpu.memory_space<vmem>>) attributes {dimension_semantics = [#tpu.dimension_semantics<parallel>, #tpu.dimension_semantics<parallel>], iteration_bounds = array<i64: 2, 1>, scalar_prefetch = 0 : i64, scratch_operands = 0 : i64, tpu.core_type = #tpu.core_type<tc>, window_params = [{transform_indices = @transform_0, window_bounds = array<i64: 1, 4, 768>}, {transform_indices = @transform_1, window_bounds = array<i64: 1, 3, 4, 256>}]} {
    %c0 = arith.constant 0 : index
    %c0_0 = arith.constant 0 : index
    %c0_1 = arith.constant 0 : index
    %0 = vector.load %arg2[%c0, %c0_0, %c0_1] : memref<1x4x768xf32, #tpu.memory_space<vmem>>, vector<1x4x256xf32>
    %c0_2 = arith.constant 0 : index
    %c0_3 = arith.constant 0 : index
    %c0_4 = arith.constant 0 : index
    %c0_5 = arith.constant 0 : index
    %1 = vector.load %arg3[%c0_2, %c0_3, %c0_4, %c0_5] : memref<1x3x4x256xf32, #tpu.memory_space<vmem>>, vector<1x1x4x256xf32>
    %2 = vector.shape_cast %1 : vector<1x1x4x256xf32> to vector<1x4x256xf32>
    %3 = vector.shape_cast %0 : vector<1x4x256xf32> to vector<1x1x4x256xf32>
    tpu.vector_store %arg3[%c0_2, %c0_3, %c0_4, %c0_5], %3 {strides = array<i32>} : memref<1x3x4x256xf32, #tpu.memory_space<vmem>>, vector<1x1x4x256xf32>,
    %c0_6 = arith.constant 0 : index
    %c0_7 = arith.constant 0 : index
    %c256 = arith.constant 256 : index
    %4 = vector.load %arg2[%c0_6, %c0_7, %c256] : memref<1x4x768xf32, #tpu.memory_space<vmem>>, vector<1x4x256xf32>
    %c0_8 = arith.constant 0 : index
    %c1 = arith.constant 1 : index
    %c0_9 = arith.constant 0 : index
    %c0_10 = arith.constant 0 : index
    %5 = vector.load %arg3[%c0_8, %c1, %c0_9, %c0_10] : memref<1x3x4x256xf32, #tpu.memory_space<vmem>>, vector<1x1x4x256xf32>
    %6 = vector.shape_cast %5 : vector<1x1x4x256xf32> to vector<1x4x256xf32>
    %7 = vector.shape_cast %4 : vector<1x4x256xf32> to vector<1x1x4x256xf32>
    tpu.vector_store %arg3[%c0_8, %c1, %c0_9, %c0_10], %7 {strides = array<i32>} : memref<1x3x4x256xf32, #tpu.memory_space<vmem>>, vector<1x1x4x256xf32>,
    %c0_11 = arith.constant 0 : index
    %c0_12 = arith.constant 0 : index
    %c512 = arith.constant 512 : index
    %8 = vector.load %arg2[%c0_11, %c0_12, %c512] : memref<1x4x768xf32, #tpu.memory_space<vmem>>, vector<1x4x256xf32>
    %c0_13 = arith.constant 0 : index
    %c2 = arith.constant 2 : index
    %c0_14 = arith.constant 0 : index
    %c0_15 = arith.constant 0 : index
    %9 = vector.load %arg3[%c0_13, %c2, %c0_14, %c0_15] : memref<1x3x4x256xf32, #tpu.memory_space<vmem>>, vector<1x1x4x256xf32>
    %10 = vector.shape_cast %9 : vector<1x1x4x256xf32> to vector<1x4x256xf32>
    %11 = vector.shape_cast %8 : vector<1x4x256xf32> to vector<1x1x4x256xf32>
    tpu.vector_store %arg3[%c0_13, %c2, %c0_14, %c0_15], %11 {strides = array<i32>} : memref<1x3x4x256xf32, #tpu.memory_space<vmem>>, vector<1x1x4x256xf32>,
    return
  }
  func.func @transform_0(%arg0: i32, %arg1: i32) -> (i32, i32, i32) {
    %c0_i32 = arith.constant 0 : i32
    %c0_i32_0 = arith.constant 0 : i32
    return %arg0, %arg1, %c0_i32 : i32, i32, i32
  }
  func.func @transform_1(%arg0: i32, %arg1: i32) -> (i32, i32, i32, i32) {
    %c0_i32 = arith.constant 0 : i32
    %c0_i32_0 = arith.constant 0 : i32
    %c0_i32_1 = arith.constant 0 : i32
    return %arg0, %c0_i32, %arg1, %c0_i32_0 : i32, i32, i32, i32
  }
}

</mosaic_0001>

<llo_original>
// kernel: tpu_custom_call.1
$region0: #{tpu_custom_call.1}
  #allocation0 [shape = 'u32[]', space=smem, size = 0x4, offset = 0x4, fixed_abs, tag = 'smem constant byte address 0x4 - core index']
  #allocation1 [shape = 'u32[144,128]{1,0:T(1,128)}', space=vmem, size = 0x12000, scoped, tag = 'internal scratch']
  %s0 = inlined_call_operand.hbm [shape: f32[2,4,768], index: 0, kind: input, shape index: {}]
  %s1 = inlined_call_operand.hbm [shape: f32[2,3,4,256], index: 1, kind: output, shape index: {}]
  %s2 = sld [smem:[#allocation0]]
  $region41: #{tpu_custom_call.1} parent=0
    _
  %s4 = ssub.s32 1, %s2
  %s5 = scalar_select 0, %s4, %s2
  $region1: #{tpu_custom_call.1} parent=0
    #allocation2 [shape = 'u8[24576]{0}', space=vmem, size = 0x6000, scoped, tag = 'input window, operand 0']
    #allocation3 [shape = 's32[2]{0}', space=sflag, size = 0x8, scoped, tag = 'scoped memory for tpu_custom_call.1']
    #allocation4 [shape = 's32[2]{0}', space=sflag, size = 0x8, scoped, tag = 'scoped memory for tpu_custom_call.1']
    #allocation5 [shape = 'u8[24576]{0}', space=vmem, size = 0x6000, scoped, tag = 'output window, operand 0']
    %6 = vsyncpa [#allocation3], 0
    %s7 = scalar_lea.sflag [#allocation3], 1
    %8 = vsyncpa %s7, 0
    %9 = vsyncpa [#allocation4], 0
    %s10 = scalar_lea.sflag [#allocation4], 1
    %11 = vsyncpa %s10, 0
    loop: start=0, step=1, limit=4
    $region2: #{tpu_custom_call.1} parent=1 // loop_pre_header
      _
    $region3: #{tpu_custom_call.1} parent=1 // loop_header
      %s13 = sphi 0, %s17
      %p14 = scmp.ge.s32.totalorder %s13, 4
      %s20 = sphi 0, %s32
      %s21 = sphi 0, %s28
      %s22 = sphi 0, %s20
      %s23 = sphi 0, %s21
      %s24 = sphi 0, %s22
      %s25 = sphi 0, %s23
      %s37 = sphi 0, %s39
      %s40 = sphi 0, %s37
      %s41 = sphi 0, %s40
      %s57 = sphi 0, %s41
      %s65 = sphi 0, %s67
      %s68 = sphi 0, %s65
      %s69 = sphi 0, %s68
      %s85 = sphi 0, %s69
    $region4: #{tpu_custom_call.1} parent=1 // loop_header_branch
      %16 = sbr.rel (%p14) target = $region8
    $region5: #{tpu_custom_call.1} parent=1 // loop_body
      %s18 = ssub.s32 %s13, 1
      %s19 = ssub.s32 %s13, 2
      %s26 = sadd.s32 1, %s21
      %p27 = scmp.ge.s32.totalorder %s26, 1
      %s28 = scalar_select %p27, 0, %s26
      %s29 = sadd.s32 1, %s20
      %s30 = scalar_select %p27, %s29, %s20
      %p31 = scmp.ge.s32.totalorder %s30, 2
      %s32 = scalar_select %p31, 0, %s30
      %s33 = ssub.s32 %s20, %s32
      %s34 = ssub.s32 %s21, %s28
      %s35 = sor.u32 %s33, %s34
      %p36 = scmp.eq.s32.totalorder %s35, 0
      %s38 = sadd.s32 %s37, 1
      %s39 = scalar_select %p36, %s37, %s38
      %p42 = pneg %p36
      %p43 = scmp.eq.s32.totalorder %s13, 1
      %p44 = por %p42, %p43
      %p45 = scmp.ne.s32.totalorder %s37, %s40
      %p46 = scmp.eq.s32.totalorder %s13, 0
      %p47 = por %p45, %p46
      %p48 = scmp.ne.s32.totalorder %s37, %s40
      %p49 = scmp.eq.s32.totalorder %s18, 1
      %p50 = por %p48, %p49
      %p51 = scmp.ne.s32.totalorder %s40, %s41
      %p52 = scmp.eq.s32.totalorder %s18, 0
      %p53 = por %p51, %p52
      %p54 = scmp.ne.s32.totalorder %s40, %s41
      %p55 = scmp.eq.s32.totalorder %s19, 1
      %p56 = por %p54, %p55
      %p58 = scmp.ne.s32.totalorder %s41, %s57
      %p59 = scmp.eq.s32.totalorder %s19, 0
      %p60 = por %p58, %p59
      %s61 = ssub.s32 %s20, %s32
      %s62 = ssub.s32 %s21, %s28
      %s63 = sor.u32 %s61, %s62
      %p64 = scmp.eq.s32.totalorder %s63, 0
      %s66 = sadd.s32 %s65, 1
      %s67 = scalar_select %p64, %s65, %s66
      %p70 = pneg %p64
      %p71 = scmp.eq.s32.totalorder %s13, 1
      %p72 = por %p70, %p71
      %p73 = scmp.ne.s32.totalorder %s65, %s68
      %p74 = scmp.eq.s32.totalorder %s13, 0
      %p75 = por %p73, %p74
      %p76 = scmp.ne.s32.totalorder %s65, %s68
      %p77 = scmp.eq.s32.totalorder %s18, 1
      %p78 = por %p76, %p77
      %p79 = scmp.ne.s32.totalorder %s68, %s69
      %p80 = scmp.eq.s32.totalorder %s18, 0
      %p81 = por %p79, %p80
      %p82 = scmp.ne.s32.totalorder %s68, %s69
      %p83 = scmp.eq.s32.totalorder %s19, 1
      %p84 = por %p82, %p83
      %p86 = scmp.ne.s32.totalorder %s69, %s85
      %p87 = scmp.eq.s32.totalorder %s19, 0
      %p88 = por %p86, %p87
      %p89 = scmp.le.s32.totalorder 1, %s13
      %p90 = scmp.lt.s32.totalorder %s13, 3
      %p91 = pnand %p89, %p90
      %p92 = pneg %p91
      // Predicated region
      $region9: #{tpu_custom_call.1} parent=5 // pred_check
        _
      $region10: #{tpu_custom_call.1} parent=5 // pred_check_branch
        %94 = sbr.rel (%p91) target = $region12
      $region11: #{tpu_custom_call.1} parent=5 // pred_region
        %s95 = ssub.s32 %s13, 1
      $region12: #{tpu_custom_call.1} parent=5 // pred_fallthru
        _
      %p96 = scmp.lt.s32.totalorder %s13, 2
      // Predicated region
      $region13: #{tpu_custom_call.1} parent=5 // pred_check
        %p97 = pneg %p96
      $region14: #{tpu_custom_call.1} parent=5 // pred_check_branch
        %99 = sbr.rel (%p97) target = $region16
      $region15: #{tpu_custom_call.1} parent=5 // pred_region
        // Predicated region
        $region17: #{tpu_custom_call.1} parent=15 // pred_check
          %p100 = pneg %p47
        $region18: #{tpu_custom_call.1} parent=15 // pred_check_branch
          %102 = sbr.rel (%p100) target = $region20
        $region19: #{tpu_custom_call.1} parent=15 // pred_region
          %s103 = sand.u32 %s37, 1
          %s104 = scalar_lea.sflag [#allocation3], %s103
          %s105 = sand.u32 %s37, 1
          %s106 = smul.addr %s105, 24
          %s107 = scalar_lea.vmem [#allocation2], %s106
          %s109 = ssub.s32 384, 384
          %110 = vsyncadd %s104, %s109
          %s111 = smul.addr %s21, 6
          %s112 = smul.addr %s20, 6
          %s113 = sadd.s32 %s111, %s112
          %s114 = smul.addr %s113, 64
          %s115 = scalar_lea.hbm %s0, %s114
          %s117 = sshll.u32 %s107, 4
          %s118 = int_to_ptr.vmem [resolvable:$true] %s117
          %120 = dma.hbm_to_vmem [thread:$0]  %s115, 384, %s118, %s104
        $region20: #{tpu_custom_call.1} parent=15 // pred_fallthru
          _
      $region16: #{tpu_custom_call.1} parent=5 // pred_fallthru
        _
      %p121 = scmp.le.s32.totalorder 1, %s13
      %p122 = scmp.lt.s32.totalorder %s13, 3
      %p123 = pnand %p121, %p122
      %p124 = pneg %p123
      // Predicated region
      $region21: #{tpu_custom_call.1} parent=5 // pred_check
        _
      $region22: #{tpu_custom_call.1} parent=5 // pred_check_branch
        %126 = sbr.rel (%p123) target = $region24
      $region23: #{tpu_custom_call.1} parent=5 // pred_region
        %s127 = ssub.s32 %s13, 1
        %s128 = sand.u32 %s40, 1
        %s129 = scalar_lea.sflag [#allocation3], %s128
        %s130 = sand.u32 %s40, 1
        %s131 = smul.addr %s130, 24
        %s132 = scalar_lea.vmem [#allocation2], %s131
        // Predicated region
        $region25: #{tpu_custom_call.1} parent=23 // pred_check
          %p133 = pneg %p53
        $region26: #{tpu_custom_call.1} parent=23 // pred_check_branch
          %135 = sbr.rel (%p133) target = $region28
        $region27: #{tpu_custom_call.1} parent=23 // pred_region
          %136 = dma.done %s129, 384
        $region28: #{tpu_custom_call.1} parent=23 // pred_fallthru
          _
        %s137 = sand.u32 %s40, 1
        %s138 = scalar_lea.sflag [#allocation3], %s137
        %s139 = sand.u32 %s40, 1
        %s140 = smul.addr %s139, 24
        %s141 = scalar_lea.vmem [#allocation2], %s140
        %p142 = pneg %p53
        %p143 = pneg %p50
        %p144 = pneg %p81
        %p145 = pneg %p78
        %s146 = sand.u32 %s68, 1
        %s147 = scalar_lea.sflag [#allocation4], %s146
        %s148 = sand.u32 %s68, 1
        %s149 = smul.addr %s148, 24
        %s150 = scalar_lea.vmem [#allocation5], %s149
        %v151 = vld [vmem:[%s132] sm:$0xff]
        %152 = vst [vmem:[%s150] sm:$0xff] %v151
        %v153 = vld [vmem:[%s132 + $0x8] sm:$0xff]
        %s154 = scalar_lea.vmem %s150, 8 [#allocation5]
        %155 = vst [vmem:[%s154] sm:$0xff] %v153
        %v156 = vld [vmem:[%s132 + $0x10] sm:$0xff]
        %s157 = scalar_lea.vmem %s150, 16 [#allocation5]
        %158 = vst [vmem:[%s157] sm:$0xff] %v156
        %s159 = sand.u32 %s68, 1
        %s160 = scalar_lea.sflag [#allocation4], %s159
        %s161 = sand.u32 %s68, 1
        %s162 = smul.addr %s161, 24
        %s163 = scalar_lea.vmem [#allocation5], %s162
        // Predicated region
        $region29: #{tpu_custom_call.1} parent=23 // pred_check
          %p164 = pneg %p78
        $region30: #{tpu_custom_call.1} parent=23 // pred_check_branch
          %166 = sbr.rel (%p164) target = $region32
        $region31: #{tpu_custom_call.1} parent=23 // pred_region
          %s168 = ssub.s32 384, 384
          %169 = vsyncadd %s160, %s168
          %s170 = smul.addr %s23, 2
          %s171 = smul.addr %s22, 6
          %s172 = sadd.s32 %s170, %s171
          %s173 = smul.addr %s172, 64
          %s174 = scalar_lea.hbm %s1, %s173
          %s175 = sshll.u32 %s163, 4
          %s176 = int_to_ptr.vmem [resolvable:$true] %s175
          %181 = dma.vmem_to_hbm [thread:$0]  %s176, 384, %s174, %s160, 128, 128, 8
        $region32: #{tpu_custom_call.1} parent=23 // pred_fallthru
          _
      $region24: #{tpu_custom_call.1} parent=5 // pred_fallthru
        _
      %p182 = scmp.le.s32.totalorder 2, %s13
      // Predicated region
      $region33: #{tpu_custom_call.1} parent=5 // pred_check
        %p183 = pneg %p182
      $region34: #{tpu_custom_call.1} parent=5 // pred_check_branch
        %185 = sbr.rel (%p183) target = $region36
      $region35: #{tpu_custom_call.1} parent=5 // pred_region
        %s186 = ssub.s32 %s13, 2
        // Predicated region
        $region37: #{tpu_custom_call.1} parent=35 // pred_check
          %p187 = pneg %p84
        $region38: #{tpu_custom_call.1} parent=35 // pred_check_branch
          %189 = sbr.rel (%p187) target = $region40
        $region39: #{tpu_custom_call.1} parent=35 // pred_region
          %s190 = sand.u32 %s69, 1
          %s191 = scalar_lea.sflag [#allocation4], %s190
          %s192 = sand.u32 %s69, 1
          %s193 = smul.addr %s192, 24
          %s194 = scalar_lea.vmem [#allocation5], %s193
          %195 = dma.done %s191, 384
        $region40: #{tpu_custom_call.1} parent=35 // pred_fallthru
          _
      $region36: #{tpu_custom_call.1} parent=5 // pred_fallthru
        _
    $region6: #{tpu_custom_call.1} parent=1 // loop_footer
      %s17 = sadd.s32 1, %s13
    $region7: #{tpu_custom_call.1} parent=1 // loop_footer_branch
      %12 = sbr.rel target = $region3
    $region8: #{tpu_custom_call.1} parent=1 // loop_exit
      _
    %196 = vsyncpa [#allocation3], 1
    %s197 = scalar_lea.sflag [#allocation3], 1
    %198 = vsyncpa %s197, 1
    %199 = vsyncpa [#allocation4], 1
    %s200 = scalar_lea.sflag [#allocation4], 1
    %201 = vsyncpa %s200, 1

</llo_original>
